<compile_context>
chip_gen: v6e
topology: v6e:2x2x1
jax: 0.10.0
libtpu: 0.0.40
codegen_flags: <defaults>
</compile_context>

<pallas_src>
import math

import jax
import jax.numpy as jnp
from jax.experimental import pallas as pl
from jax.experimental.pallas import tpu as pltpu


def _round_up(x: int, m: int) -> int:
    return ((x + m - 1) // m) * m


def _round_down(x: int, m: int) -> int:
    return (x // m) * m


def _logreg_kernel(x_ref, w_ref, b_ref, o_ref):
    # x_ref: (TB, D)  activation tile (streamed)
    # w_ref: (D, C)   pre-transposed weight (resident; same block every step)
    # b_ref: (1, C)   bias (resident)
    # o_ref: (TB, C)  output tile (f32 logits)
    o_ref[...] = (
        jnp.dot(x_ref[...], w_ref[...], preferred_element_type=jnp.float32)
        + b_ref[...]
    )


def logistic_regression_forward(x, weight, bias, *, block_b: int | None = None):
    """
    x:      (B, input_size)            float32 or bfloat16
    weight: (num_classes, input_size)  float32 (PyTorch nn.Linear layout)
    bias:   (num_classes,)             float32
    returns logits (B, num_classes)    float32

    To halve streamed HBM bytes (recommended on v6e/v7x), pass x already in
    bfloat16 -- the wrapper deliberately does NOT cast x itself (that would add
    an extra HBM pass). MXU accumulation is always f32.

    block_b: batch-tile rows. Default 2048 (f32) / 4096 (bf16), automatically
    capped so the double-buffered x stream stays under ~12 MiB of VMEM
    (fits v5e's 16 MiB scoped default; v6e/v7x have more headroom).
    """
    B, D = x.shape
    C = weight.shape[0]

    bytes_per = jnp.dtype(x.dtype).itemsize        # 4 (f32) or 2 (bf16)
    sublane = (8 * 4) // bytes_per                  # 8 for f32, 16 for bf16

    if block_b is None:
        block_b = 4096 if bytes_per == 2 else 2048

    # Cap the x tile so 2 buffers fit comfortably in scoped VMEM on all gens.
    vmem_x_budget = 12 * 1024 * 1024
    tb_cap = max(sublane, _round_down(vmem_x_budget // (2 * D * bytes_per), sublane))

    tb = min(_round_up(block_b, sublane), tb_cap, _round_up(B, sublane))
    tb = max(tb, sublane)
    num_tiles = (B + tb - 1) // tb                  # ragged last block is masked

    # One-time tiny prep (no full-x copies): transpose weight, match x dtype.
    w_t = weight.astype(x.dtype).T                  # (D, C)
    b2 = bias.astype(jnp.float32).reshape(1, C)

    out = pl.pallas_call(
        _logreg_kernel,
        out_shape=jax.ShapeDtypeStruct((B, C), jnp.float32),
        grid_spec=pltpu.PrefetchScalarGridSpec(
            num_scalar_prefetch=0,
            grid=(num_tiles,),
            in_specs=[
                pl.BlockSpec((tb, D), lambda i: (i, 0)),   # stream x tiles
                pl.BlockSpec((D, C), lambda i: (0, 0)),    # resident weight^T
                pl.BlockSpec((1, C), lambda i: (0, 0)),    # resident bias
            ],
            out_specs=pl.BlockSpec((tb, C), lambda i: (i, 0)),
        ),
        compiler_params=pltpu.CompilerParams(
            dimension_semantics=("parallel",),             # megacore sharding on v7x
        ),
    )(x, w_t, b2)

    return out


def init_params(key, input_size, num_classes):
    """Xavier/Glorot uniform init for weight, zeros for bias (matches module)."""
    bound = math.sqrt(6.0 / (input_size + num_classes))
    kw, _ = jax.random.split(key)
    weight = jax.random.uniform(
        kw, (num_classes, input_size), dtype=jnp.float32,
        minval=-bound, maxval=bound)
    bias = jnp.zeros((num_classes,), dtype=jnp.float32)
    return weight, bias


if __name__ == "__main__":
    key = jax.random.PRNGKey(0)
    k_x, k_p = jax.random.split(key)

    batch = 50            # intentionally not a multiple of 8 -> ragged last block
    input_size = 768      # MMTD fusion output size
    num_classes = 2

    x = jax.random.normal(k_x, (batch, input_size), dtype=jnp.float32)
    weight, bias = init_params(k_p, input_size, num_classes)

    ref = x @ weight.T + bias

    # 1) default tiling: tiny B collapses to a single grid step
    logits = jax.block_until_ready(logistic_regression_forward(x, weight, bias))
    assert logits.shape == (batch, num_classes)
    assert logits.dtype == jnp.float32
    assert jnp.allclose(logits, ref, atol=1e-5, rtol=1e-5)

    # 2) force a multi-step pipelined grid with a ragged last block
    logits_multi = jax.block_until_ready(
        logistic_regression_forward(x, weight, bias, block_b=16))
    assert jnp.allclose(logits_multi, ref, atol=1e-5, rtol=1e-5)

    # 3) bf16-streaming path: caller supplies bf16 activations (no wrapper cast)
    logits_bf16 = jax.block_until_ready(
        logistic_regression_forward(x.astype(jnp.bfloat16), weight, bias))
    assert jnp.allclose(logits_bf16, ref, atol=5e-2, rtol=5e-2)

    print("KERNEL_OK")
</pallas_src>

<mosaic_0001>
module attributes {stable_mosaic.version = 11 : i64} {
  func.func @_logreg_kernel(%arg0: i32, %arg1: memref<56x768xf32, #tpu.memory_space<vmem>>, %arg2: memref<768x2xf32, #tpu.memory_space<vmem>>, %arg3: memref<1x2xf32, #tpu.memory_space<vmem>>, %arg4: memref<56x2xf32, #tpu.memory_space<vmem>>) attributes {dimension_semantics = [#tpu.dimension_semantics<parallel>], iteration_bounds = array<i64: 1>, scalar_prefetch = 0 : i64, scratch_operands = 0 : i64, tpu.core_type = #tpu.core_type<tc>, window_params = [{transform_indices = @transform_0, window_bounds = array<i64: 56, 768>}, {pipeline_mode = #tpu.pipeline_mode<synchronous>, transform_indices = @transform_1, window_bounds = array<i64: 768, 2>}, {pipeline_mode = #tpu.pipeline_mode<synchronous>, transform_indices = @transform_2, window_bounds = array<i64: 1, 2>}, {transform_indices = @transform_3, window_bounds = array<i64: 56, 2>}]} {
    %c0 = arith.constant 0 : index
    %c0_0 = arith.constant 0 : index
    %0 = vector.load %arg1[%c0, %c0_0] : memref<56x768xf32, #tpu.memory_space<vmem>>, vector<56x768xf32>
    %c0_1 = arith.constant 0 : index
    %c0_2 = arith.constant 0 : index
    %1 = vector.load %arg2[%c0_1, %c0_2] : memref<768x2xf32, #tpu.memory_space<vmem>>, vector<768x2xf32>
    %cst = arith.constant dense<0.000000e+00> : vector<56x2xf32>
    %2 = tpu.matmul %0, %1, %cst {dimension_numbers = #tpu.dot_dimension_numbers<[1], [0], [0], [1], [0, 0, 1, 1], [], []>} : vector<56x768xf32>, vector<768x2xf32>, vector<56x2xf32> -> vector<56x2xf32>
    %c0_3 = arith.constant 0 : index
    %c0_4 = arith.constant 0 : index
    %3 = vector.load %arg3[%c0_3, %c0_4] : memref<1x2xf32, #tpu.memory_space<vmem>>, vector<1x2xf32>
    %4 = vector.broadcast %3 : vector<1x2xf32> to vector<56x2xf32>
    %5 = arith.addf %2, %4 : vector<56x2xf32>
    %c0_5 = arith.constant 0 : index
    %c0_6 = arith.constant 0 : index
    %6 = vector.load %arg4[%c0_5, %c0_6] : memref<56x2xf32, #tpu.memory_space<vmem>>, vector<56x2xf32>
    tpu.vector_store %arg4[%c0_5, %c0_6], %5 {strides = array<i32>} : memref<56x2xf32, #tpu.memory_space<vmem>>, vector<56x2xf32>,
    return
  }
  func.func @transform_0(%arg0: i32) -> (i32, i32) {
    %c0_i32 = arith.constant 0 : i32
    %c0_i32_0 = arith.constant 0 : i32
    return %arg0, %c0_i32 : i32, i32
  }
  func.func @transform_1(%arg0: i32) -> (i32, i32) {
    %c0_i32 = arith.constant 0 : i32
    %c0_i32_0 = arith.constant 0 : i32
    %c0_i32_1 = arith.constant 0 : i32
    return %c0_i32, %c0_i32_0 : i32, i32
  }
  func.func @transform_2(%arg0: i32) -> (i32, i32) {
    %c0_i32 = arith.constant 0 : i32
    %c0_i32_0 = arith.constant 0 : i32
    %c0_i32_1 = arith.constant 0 : i32
    return %c0_i32, %c0_i32_0 : i32, i32
  }
  func.func @transform_3(%arg0: i32) -> (i32, i32) {
    %c0_i32 = arith.constant 0 : i32
    %c0_i32_0 = arith.constant 0 : i32
    return %arg0, %c0_i32 : i32, i32
  }
}

</mosaic_0001>

<llo_original>
// kernel: tpu_custom_call.1
$region0: #{tpu_custom_call.1}
  #allocation0 [shape = 'u32[]', space=smem, size = 0x4, offset = 0x4, fixed_abs, tag = 'smem constant byte address 0x4 - core index']
  #allocation1 [shape = 'u32[144,128]{1,0:T(1,128)}', space=vmem, size = 0x12000, scoped, tag = 'internal scratch']
  %s0 = inlined_call_operand.vmem [shape: f32[50,768], index: 0, kind: input, shape index: {}]
  %s1 = inlined_call_operand.vmem [shape: f32[768,2], index: 1, kind: input, shape index: {}]
  %s2 = inlined_call_operand.vmem [shape: f32[1,2], index: 2, kind: input, shape index: {}]
  %s3 = inlined_call_operand.vmem [shape: f32[50,2], index: 3, kind: output, shape index: {}]
  %s4 = sld [smem:[#allocation0]]
  $region22: #{tpu_custom_call.1} parent=0
    _
  %s6 = ssub.s32 1, %s4
  %s7 = scalar_select 0, %s6, %s4
  // Predicated region
  $region2: #{tpu_custom_call.1} parent=0 // pred_check
    _
  $region3: #{tpu_custom_call.1} parent=0 // pred_check_branch
    %9 = sbr.rel (0) target = $region5
  $region4: #{tpu_custom_call.1} parent=0 // pred_region
    _
  $region5: #{tpu_custom_call.1} parent=0 // pred_fallthru
    _
  // Predicated region
  $region6: #{tpu_custom_call.1} parent=0 // pred_check
    _
  $region7: #{tpu_custom_call.1} parent=0 // pred_check_branch
    %11 = sbr.rel (0) target = $region9
  $region8: #{tpu_custom_call.1} parent=0 // pred_region
    _
  $region9: #{tpu_custom_call.1} parent=0 // pred_fallthru
    _
  // Predicated region
  $region10: #{tpu_custom_call.1} parent=0 // pred_check
    _
  $region11: #{tpu_custom_call.1} parent=0 // pred_check_branch
    %13 = sbr.rel (0) target = $region13
  $region12: #{tpu_custom_call.1} parent=0 // pred_region
    _
  $region13: #{tpu_custom_call.1} parent=0 // pred_fallthru
    _
  %v14 = vld [vmem:[%s0] sm:$0xff]
  %v15 = vld [vmem:[%s0 + $0x8] sm:$0xff]
  %v16 = vld [vmem:[%s0 + $0x10] sm:$0xff]
  %v17 = vld [vmem:[%s0 + $0x18] sm:$0xff]
  %v18 = vld [vmem:[%s0 + $0x20] sm:$0xff]
  %v19 = vld [vmem:[%s0 + $0x28] sm:$0xff]
  %v20 = vld [vmem:[%s0 + $0x30] sm:$0xff]
  %v21 = vld [vmem:[%s0 + $0x38] sm:$0xff]
  %v22 = vld [vmem:[%s0 + $0x40] sm:$0xff]
  %v23 = vld [vmem:[%s0 + $0x48] sm:$0xff]
  %v24 = vld [vmem:[%s0 + $0x50] sm:$0xff]
  %v25 = vld [vmem:[%s0 + $0x58] sm:$0xff]
  %v26 = vld [vmem:[%s0 + $0x60] sm:$0xff]
  %v27 = vld [vmem:[%s0 + $0x68] sm:$0xff]
  %v28 = vld [vmem:[%s0 + $0x70] sm:$0xff]
  %v29 = vld [vmem:[%s0 + $0x78] sm:$0xff]
  %v30 = vld [vmem:[%s0 + $0x80] sm:$0xff]
  %v31 = vld [vmem:[%s0 + $0x88] sm:$0xff]
  %v32 = vld [vmem:[%s0 + $0x90] sm:$0xff]
  %v33 = vld [vmem:[%s0 + $0x98] sm:$0xff]
  %v34 = vld [vmem:[%s0 + $0xa0] sm:$0xff]
  %v35 = vld [vmem:[%s0 + $0xa8] sm:$0xff]
  %v36 = vld [vmem:[%s0 + $0xb0] sm:$0xff]
  %v37 = vld [vmem:[%s0 + $0xb8] sm:$0xff]
  %v38 = vld [vmem:[%s0 + $0xc0] sm:$0xff]
  %v39 = vld [vmem:[%s0 + $0xc8] sm:$0xff]
  %v40 = vld [vmem:[%s0 + $0xd0] sm:$0xff]
  %v41 = vld [vmem:[%s0 + $0xd8] sm:$0xff]
  %v42 = vld [vmem:[%s0 + $0xe0] sm:$0xff]
  %v43 = vld [vmem:[%s0 + $0xe8] sm:$0xff]
  %v44 = vld [vmem:[%s0 + $0xf0] sm:$0xff]
  %v45 = vld [vmem:[%s0 + $0xf8] sm:$0xff]
  %v46 = vld [vmem:[%s0 + $0x100] sm:$0xff]
  %v47 = vld [vmem:[%s0 + $0x108] sm:$0xff]
  %v48 = vld [vmem:[%s0 + $0x110] sm:$0xff]
  %v49 = vld [vmem:[%s0 + $0x118] sm:$0xff]
  %v50 = vld [vmem:[%s0 + $0x120] sm:$0xff]
  %v51 = vld [vmem:[%s0 + $0x128] sm:$0xff]
  %v52 = vld [vmem:[%s0 + $0x130] sm:$0xff]
  %v53 = vld [vmem:[%s0 + $0x138] sm:$0xff]
  %v54 = vld [vmem:[%s0 + $0x140] sm:$0xff]
  %v55 = vld [vmem:[%s0 + $0x148] sm:$0xff]
  %v56 = vld [vmem:[%s1] sm:$0xff]
  %v57 = vld [vmem:[%s1 + $0x8] sm:$0xff]
  %v58 = vld [vmem:[%s1 + $0x10] sm:$0xff]
  %v59 = vld [vmem:[%s1 + $0x18] sm:$0xff]
  %v60 = vld [vmem:[%s1 + $0x20] sm:$0xff]
  %v61 = vld [vmem:[%s1 + $0x28] sm:$0xff]
  %v62 = vld [vmem:[%s1 + $0x30] sm:$0xff]
  %v63 = vld [vmem:[%s1 + $0x38] sm:$0xff]
  %v64 = vld [vmem:[%s1 + $0x40] sm:$0xff]
  %v65 = vld [vmem:[%s1 + $0x48] sm:$0xff]
  %v66 = vld [vmem:[%s1 + $0x50] sm:$0xff]
  %v67 = vld [vmem:[%s1 + $0x58] sm:$0xff]
  %v68 = vld [vmem:[%s1 + $0x60] sm:$0xff]
  %v69 = vld [vmem:[%s1 + $0x68] sm:$0xff]
  %v70 = vld [vmem:[%s1 + $0x70] sm:$0xff]
  %v71 = vld [vmem:[%s1 + $0x78] sm:$0xff]
  %v72 = vld [vmem:[%s1 + $0x80] sm:$0xff]
  %v73 = vld [vmem:[%s1 + $0x88] sm:$0xff]
  %v74 = vld [vmem:[%s1 + $0x90] sm:$0xff]
  %v75 = vld [vmem:[%s1 + $0x98] sm:$0xff]
  %v76 = vld [vmem:[%s1 + $0xa0] sm:$0xff]
  %v77 = vld [vmem:[%s1 + $0xa8] sm:$0xff]
  %v78 = vld [vmem:[%s1 + $0xb0] sm:$0xff]
  %v79 = vld [vmem:[%s1 + $0xb8] sm:$0xff]
  %v80 = vld [vmem:[%s1 + $0xc0] sm:$0xff]
  %v81 = vld [vmem:[%s1 + $0xc8] sm:$0xff]
  %v82 = vld [vmem:[%s1 + $0xd0] sm:$0xff]
  %v83 = vld [vmem:[%s1 + $0xd8] sm:$0xff]
  %v84 = vld [vmem:[%s1 + $0xe0] sm:$0xff]
  %v85 = vld [vmem:[%s1 + $0xe8] sm:$0xff]
  %v86 = vld [vmem:[%s1 + $0xf0] sm:$0xff]
  %v87 = vld [vmem:[%s1 + $0xf8] sm:$0xff]
  %v88 = vld [vmem:[%s1 + $0x100] sm:$0xff]
  %v89 = vld [vmem:[%s1 + $0x108] sm:$0xff]
  %v90 = vld [vmem:[%s1 + $0x110] sm:$0xff]
  %v91 = vld [vmem:[%s1 + $0x118] sm:$0xff]
  %v92 = vld [vmem:[%s1 + $0x120] sm:$0xff]
  %v93 = vld [vmem:[%s1 + $0x128] sm:$0xff]
  %v94 = vld [vmem:[%s1 + $0x130] sm:$0xff]
  %v95 = vld [vmem:[%s1 + $0x138] sm:$0xff]
  %v96 = vld [vmem:[%s1 + $0x140] sm:$0xff]
  %v97 = vld [vmem:[%s1 + $0x148] sm:$0xff]
  %v98 = vld [vmem:[%s1 + $0x150] sm:$0xff]
  %v99 = vld [vmem:[%s1 + $0x158] sm:$0xff]
  %v100 = vld [vmem:[%s1 + $0x160] sm:$0xff]
  %v101 = vld [vmem:[%s1 + $0x168] sm:$0xff]
  %v102 = vld [vmem:[%s1 + $0x170] sm:$0xff]
  %v103 = vld [vmem:[%s1 + $0x178] sm:$0xff]
  %v104 = vld [vmem:[%s1 + $0x180] sm:$0xff]
  %v105 = vld [vmem:[%s1 + $0x188] sm:$0xff]
  %v106 = vld [vmem:[%s1 + $0x190] sm:$0xff]
  %v107 = vld [vmem:[%s1 + $0x198] sm:$0xff]
  %v108 = vld [vmem:[%s1 + $0x1a0] sm:$0xff]
  %v109 = vld [vmem:[%s1 + $0x1a8] sm:$0xff]
  %v110 = vld [vmem:[%s1 + $0x1b0] sm:$0xff]
  %v111 = vld [vmem:[%s1 + $0x1b8] sm:$0xff]
  %v112 = vld [vmem:[%s1 + $0x1c0] sm:$0xff]
  %v113 = vld [vmem:[%s1 + $0x1c8] sm:$0xff]
  %v114 = vld [vmem:[%s1 + $0x1d0] sm:$0xff]
  %v115 = vld [vmem:[%s1 + $0x1d8] sm:$0xff]
  %v116 = vld [vmem:[%s1 + $0x1e0] sm:$0xff]
  %v117 = vld [vmem:[%s1 + $0x1e8] sm:$0xff]
  %v118 = vld [vmem:[%s1 + $0x1f0] sm:$0xff]
  %v119 = vld [vmem:[%s1 + $0x1f8] sm:$0xff]
  %v120 = vld [vmem:[%s1 + $0x200] sm:$0xff]
  %v121 = vld [vmem:[%s1 + $0x208] sm:$0xff]
  %v122 = vld [vmem:[%s1 + $0x210] sm:$0xff]
  %v123 = vld [vmem:[%s1 + $0x218] sm:$0xff]
  %v124 = vld [vmem:[%s1 + $0x220] sm:$0xff]
  %v125 = vld [vmem:[%s1 + $0x228] sm:$0xff]
  %v126 = vld [vmem:[%s1 + $0x230] sm:$0xff]
  %v127 = vld [vmem:[%s1 + $0x238] sm:$0xff]
  %v128 = vld [vmem:[%s1 + $0x240] sm:$0xff]
  %v129 = vld [vmem:[%s1 + $0x248] sm:$0xff]
  %v130 = vld [vmem:[%s1 + $0x250] sm:$0xff]
  %v131 = vld [vmem:[%s1 + $0x258] sm:$0xff]
  %v132 = vld [vmem:[%s1 + $0x260] sm:$0xff]
  %v133 = vld [vmem:[%s1 + $0x268] sm:$0xff]
  %v134 = vld [vmem:[%s1 + $0x270] sm:$0xff]
  %v135 = vld [vmem:[%s1 + $0x278] sm:$0xff]
  %v136 = vld [vmem:[%s1 + $0x280] sm:$0xff]
  %v137 = vld [vmem:[%s1 + $0x288] sm:$0xff]
  %v138 = vld [vmem:[%s1 + $0x290] sm:$0xff]
  %v139 = vld [vmem:[%s1 + $0x298] sm:$0xff]
  %v140 = vld [vmem:[%s1 + $0x2a0] sm:$0xff]
  %v141 = vld [vmem:[%s1 + $0x2a8] sm:$0xff]
  %v142 = vld [vmem:[%s1 + $0x2b0] sm:$0xff]
  %v143 = vld [vmem:[%s1 + $0x2b8] sm:$0xff]
  %v144 = vld [vmem:[%s1 + $0x2c0] sm:$0xff]
  %v145 = vld [vmem:[%s1 + $0x2c8] sm:$0xff]
  %v146 = vld [vmem:[%s1 + $0x2d0] sm:$0xff]
  %v147 = vld [vmem:[%s1 + $0x2d8] sm:$0xff]
  %v148 = vld [vmem:[%s1 + $0x2e0] sm:$0xff]
  %v149 = vld [vmem:[%s1 + $0x2e8] sm:$0xff]
  %v150 = vld [vmem:[%s1 + $0x2f0] sm:$0xff]
  %v151 = vld [vmem:[%s1 + $0x2f8] sm:$0xff]
  %v152 = vld [vmem:[%s2] sm:$0x1]
  %v154 = vlaneseq
  %v155 = vshrl.u32 %v154, 7
  %v156 = vsub.s32 0, %v155
  %v157 = vrot.slane %v152, %v156
  %159 = vmatprep.subr.mxu0 0.0
  %160 = vmatpush1.msra.mxu0 %v71
  %161 = vmatprep.subr.mxu0 0.0
  %162 = vmatpush1.msra.mxu0 %v70
  %163 = vmatprep.subr.mxu0 0.0
  %164 = vmatpush1.msra.mxu0 %v69
  %165 = vmatprep.subr.mxu0 0.0
  %166 = vmatpush1.msra.mxu0 %v68
  %167 = vmatprep.subr.mxu0 0.0
  %168 = vmatpush1.msra.mxu0 %v67
  %169 = vmatprep.subr.mxu0 0.0
  %170 = vmatpush1.msra.mxu0 %v66
  %171 = vmatprep.subr.mxu0 0.0
  %172 = vmatpush1.msra.mxu0 %v65
  %173 = vmatprep.subr.mxu0 0.0
  %174 = vmatpush1.msra.mxu0 %v64
  %175 = vmatprep.subr.mxu0 0.0
  %176 = vmatpush1.msra.mxu0 %v63
  %177 = vmatprep.subr.mxu0 0.0
  %178 = vmatpush1.msra.mxu0 %v62
  %179 = vmatprep.subr.mxu0 0.0
  %180 = vmatpush1.msra.mxu0 %v61
  %181 = vmatprep.subr.mxu0 0.0
  %182 = vmatpush1.msra.mxu0 %v60
  %183 = vmatprep.subr.mxu0 0.0
  %184 = vmatpush1.msra.mxu0 %v59
  %185 = vmatprep.subr.mxu0 0.0
  %186 = vmatpush1.msra.mxu0 %v58
  %187 = vmatprep.subr.mxu0 0.0
  %188 = vmatpush1.msra.mxu0 %v57
  %189 = vmatprep.subr.mxu0 0.0
  %190 = vmatpush1.msra.mxu0 %v56
  %191 = vmatprep.subr.mxu0 0.0
  %192 = vmatpush2.msra.mxu0 %v87
  %193 = vmatprep.subr.mxu0 0.0
  %194 = vmatpush2.msra.mxu0 %v86
  %195 = vmatprep.subr.mxu0 0.0
  %196 = vmatpush2.msra.mxu0 %v85
  %197 = vmatprep.subr.mxu0 0.0
  %198 = vmatpush2.msra.mxu0 %v84
  %199 = vmatprep.subr.mxu0 0.0
  %200 = vmatpush2.msra.mxu0 %v83
  %201 = vmatprep.subr.mxu0 0.0
  %202 = vmatpush2.msra.mxu0 %v82
  %203 = vmatprep.subr.mxu0 0.0
  %204 = vmatpush2.msra.mxu0 %v81
  %205 = vmatprep.subr.mxu0 0.0
  %206 = vmatpush2.msra.mxu0 %v80
  %207 = vmatprep.subr.mxu0 0.0
  %208 = vmatpush2.msra.mxu0 %v79
  %209 = vmatprep.subr.mxu0 0.0
  %210 = vmatpush2.msra.mxu0 %v78
  %211 = vmatprep.subr.mxu0 0.0
  %212 = vmatpush2.msra.mxu0 %v77
  %213 = vmatprep.subr.mxu0 0.0
  %214 = vmatpush2.msra.mxu0 %v76
  %215 = vmatprep.subr.mxu0 0.0
  %216 = vmatpush2.msra.mxu0 %v75
  %217 = vmatprep.subr.mxu0 0.0
  %218 = vmatpush2.msra.mxu0 %v74
  %219 = vmatprep.subr.mxu0 0.0
  %220 = vmatpush2.msra.mxu0 %v73
  %221 = vmatprep.subr.mxu0 0.0
  %222 = vmatpush2.msra.mxu0 %v72
  %223 = vmatprep.mubr.f32.mxu0 %v15
  %224 = vmatmul.mubr.f32.gmra.mxu0 %v14
  %v225 = vpop.f32.mrf.mxu0
  %v226 = vadd.f32 %v157, %v225
  %v227 = vpop.f32.mrf.mxu0
  %228 = vmatprep.mubr.f32.mxu0 %v21
  %229 = vmatmul.mubr.f32.gmra.mxu0 %v20
  %v230 = vpop.f32.mrf.mxu0
  %v231 = vadd.f32 %v157, %v230
  %v232 = vpop.f32.mrf.mxu0
  %233 = vmatprep.mubr.f32.mxu0 %v27
  %234 = vmatmul.mubr.f32.gmra.mxu0 %v26
  %v235 = vpop.f32.mrf.mxu0
  %v236 = vadd.f32 %v157, %v235
  %v237 = vpop.f32.mrf.mxu0
  %238 = vmatprep.mubr.f32.mxu0 %v33
  %239 = vmatmul.mubr.f32.gmra.mxu0 %v32
  %v240 = vpop.f32.mrf.mxu0
  %v241 = vadd.f32 %v157, %v240
  %v242 = vpop.f32.mrf.mxu0
  %243 = vmatprep.mubr.f32.mxu0 %v39
  %244 = vmatmul.mubr.f32.gmra.mxu0 %v38
  %v245 = vpop.f32.mrf.mxu0
  %v246 = vadd.f32 %v157, %v245
  %v247 = vpop.f32.mrf.mxu0
  %248 = vmatprep.mubr.f32.mxu0 %v45
  %249 = vmatmul.mubr.f32.gmra.mxu0 %v44
  %v250 = vpop.f32.mrf.mxu0
  %v251 = vadd.f32 %v157, %v250
  %v252 = vpop.f32.mrf.mxu0
  %253 = vmatprep.mubr.f32.mxu0 %v51
  %254 = vmatmul.mubr.f32.gmra.mxu0 %v50
  %v255 = vpop.f32.mrf.mxu0
  %v256 = vadd.f32 %v157, %v255
  %v257 = vpop.f32.mrf.mxu0
  %258 = vdwg.mxu0
  %259 = vmatprep.subr.mxu0 0.0
  %260 = vmatpush1.msra.mxu0 %v103
  %261 = vmatprep.subr.mxu0 0.0
  %262 = vmatpush1.msra.mxu0 %v102
  %263 = vmatprep.subr.mxu0 0.0
  %264 = vmatpush1.msra.mxu0 %v101
  %265 = vmatprep.subr.mxu0 0.0
  %266 = vmatpush1.msra.mxu0 %v100
  %267 = vmatprep.subr.mxu0 0.0
  %268 = vmatpush1.msra.mxu0 %v99
  %269 = vmatprep.subr.mxu0 0.0
  %270 = vmatpush1.msra.mxu0 %v98
  %271 = vmatprep.subr.mxu0 0.0
  %272 = vmatpush1.msra.mxu0 %v97
  %273 = vmatprep.subr.mxu0 0.0
  %274 = vmatpush1.msra.mxu0 %v96
  %275 = vmatprep.subr.mxu0 0.0
  %276 = vmatpush1.msra.mxu0 %v95
  %277 = vmatprep.subr.mxu0 0.0
  %278 = vmatpush1.msra.mxu0 %v94
  %279 = vmatprep.subr.mxu0 0.0
  %280 = vmatpush1.msra.mxu0 %v93
  %281 = vmatprep.subr.mxu0 0.0
  %282 = vmatpush1.msra.mxu0 %v92
  %283 = vmatprep.subr.mxu0 0.0
  %284 = vmatpush1.msra.mxu0 %v91
  %285 = vmatprep.subr.mxu0 0.0
  %286 = vmatpush1.msra.mxu0 %v90
  %287 = vmatprep.subr.mxu0 0.0
  %288 = vmatpush1.msra.mxu0 %v89
  %289 = vmatprep.subr.mxu0 0.0
  %290 = vmatpush1.msra.mxu0 %v88
  %291 = vmatprep.subr.mxu0 0.0
  %292 = vmatpush2.msra.mxu0 %v119
  %293 = vmatprep.subr.mxu0 0.0
  %294 = vmatpush2.msra.mxu0 %v118
  %295 = vmatprep.subr.mxu0 0.0
  %296 = vmatpush2.msra.mxu0 %v117
  %297 = vmatprep.subr.mxu0 0.0
  %298 = vmatpush2.msra.mxu0 %v116
  %299 = vmatprep.subr.mxu0 0.0
  %300 = vmatpush2.msra.mxu0 %v115
  %301 = vmatprep.subr.mxu0 0.0
  %302 = vmatpush2.msra.mxu0 %v114
  %303 = vmatprep.subr.mxu0 0.0
  %304 = vmatpush2.msra.mxu0 %v113
  %305 = vmatprep.subr.mxu0 0.0
  %306 = vmatpush2.msra.mxu0 %v112
  %307 = vmatprep.subr.mxu0 0.0
  %308 = vmatpush2.msra.mxu0 %v111
  %309 = vmatprep.subr.mxu0 0.0
  %310 = vmatpush2.msra.mxu0 %v110
  %311 = vmatprep.subr.mxu0 0.0
  %312 = vmatpush2.msra.mxu0 %v109
  %313 = vmatprep.subr.mxu0 0.0
  %314 = vmatpush2.msra.mxu0 %v108
  %315 = vmatprep.subr.mxu0 0.0
  %316 = vmatpush2.msra.mxu0 %v107
  %317 = vmatprep.subr.mxu0 0.0
  %318 = vmatpush2.msra.mxu0 %v106
  %319 = vmatprep.subr.mxu0 0.0
  %320 = vmatpush2.msra.mxu0 %v105
  %321 = vmatprep.subr.mxu0 0.0
  %322 = vmatpush2.msra.mxu0 %v104
  %323 = vmatprep.mubr.f32.mxu0 %v17
  %324 = vmatmul.mubr.f32.gmra.mxu0 %v16
  %v325 = vpop.f32.mrf.mxu0
  %v326 = vadd.f32 %v226, %v325
  %v327 = vpop.f32.mrf.mxu0
  %328 = vmatprep.mubr.f32.mxu0 %v23
  %329 = vmatmul.mubr.f32.gmra.mxu0 %v22
  %v330 = vpop.f32.mrf.mxu0
  %v331 = vadd.f32 %v231, %v330
  %v332 = vpop.f32.mrf.mxu0
  %333 = vmatprep.mubr.f32.mxu0 %v29
  %334 = vmatmul.mubr.f32.gmra.mxu0 %v28
  %v335 = vpop.f32.mrf.mxu0
  %v336 = vadd.f32 %v236, %v335
  %v337 = vpop.f32.mrf.mxu0
  %338 = vmatprep.mubr.f32.mxu0 %v35
  %339 = vmatmul.mubr.f32.gmra.mxu0 %v34
  %v340 = vpop.f32.mrf.mxu0
  %v341 = vadd.f32 %v241, %v340
  %v342 = vpop.f32.mrf.mxu0
  %343 = vmatprep.mubr.f32.mxu0 %v41
  %344 = vmatmul.mubr.f32.gmra.mxu0 %v40
  %v345 = vpop.f32.mrf.mxu0
  %v346 = vadd.f32 %v246, %v345
  %v347 = vpop.f32.mrf.mxu0
  %348 = vmatprep.mubr.f32.mxu0 %v47
  %349 = vmatmul.mubr.f32.gmra.mxu0 %v46
  %v350 = vpop.f32.mrf.mxu0
  %v351 = vadd.f32 %v251, %v350
  %v352 = vpop.f32.mrf.mxu0
  %353 = vmatprep.mubr.f32.mxu0 %v53
  %354 = vmatmul.mubr.f32.gmra.mxu0 %v52
  %v355 = vpop.f32.mrf.mxu0
  %v356 = vadd.f32 %v256, %v355
  %v357 = vpop.f32.mrf.mxu0
  %358 = vdwg.mxu0
  %359 = vmatprep.subr.mxu0 0.0
  %360 = vmatpush1.msra.mxu0 %v135
  %361 = vmatprep.subr.mxu0 0.0
  %362 = vmatpush1.msra.mxu0 %v134
  %363 = vmatprep.subr.mxu0 0.0
  %364 = vmatpush1.msra.mxu0 %v133
  %365 = vmatprep.subr.mxu0 0.0
  %366 = vmatpush1.msra.mxu0 %v132
  %367 = vmatprep.subr.mxu0 0.0
  %368 = vmatpush1.msra.mxu0 %v131
  %369 = vmatprep.subr.mxu0 0.0
  %370 = vmatpush1.msra.mxu0 %v130
  %371 = vmatprep.subr.mxu0 0.0
  %372 = vmatpush1.msra.mxu0 %v129
  %373 = vmatprep.subr.mxu0 0.0
  %374 = vmatpush1.msra.mxu0 %v128
  %375 = vmatprep.subr.mxu0 0.0
  %376 = vmatpush1.msra.mxu0 %v127
  %377 = vmatprep.subr.mxu0 0.0
  %378 = vmatpush1.msra.mxu0 %v126
  %379 = vmatprep.subr.mxu0 0.0
  %380 = vmatpush1.msra.mxu0 %v125
  %381 = vmatprep.subr.mxu0 0.0
  %382 = vmatpush1.msra.mxu0 %v124
  %383 = vmatprep.subr.mxu0 0.0
  %384 = vmatpush1.msra.mxu0 %v123
  %385 = vmatprep.subr.mxu0 0.0
  %386 = vmatpush1.msra.mxu0 %v122
  %387 = vmatprep.subr.mxu0 0.0
  %388 = vmatpush1.msra.mxu0 %v121
  %389 = vmatprep.subr.mxu0 0.0
  %390 = vmatpush1.msra.mxu0 %v120
  %391 = vmatprep.subr.mxu0 0.0
  %392 = vmatpush2.msra.mxu0 %v151
  %393 = vmatprep.subr.mxu0 0.0
  %394 = vmatpush2.msra.mxu0 %v150
  %395 = vmatprep.subr.mxu0 0.0
  %396 = vmatpush2.msra.mxu0 %v149
  %397 = vmatprep.subr.mxu0 0.0
  %398 = vmatpush2.msra.mxu0 %v148
  %399 = vmatprep.subr.mxu0 0.0
  %400 = vmatpush2.msra.mxu0 %v147
  %401 = vmatprep.subr.mxu0 0.0
  %402 = vmatpush2.msra.mxu0 %v146
  %403 = vmatprep.subr.mxu0 0.0
  %404 = vmatpush2.msra.mxu0 %v145
  %405 = vmatprep.subr.mxu0 0.0
  %406 = vmatpush2.msra.mxu0 %v144
  %407 = vmatprep.subr.mxu0 0.0
  %408 = vmatpush2.msra.mxu0 %v143
  %409 = vmatprep.subr.mxu0 0.0
  %410 = vmatpush2.msra.mxu0 %v142
  %411 = vmatprep.subr.mxu0 0.0
  %412 = vmatpush2.msra.mxu0 %v141
  %413 = vmatprep.subr.mxu0 0.0
  %414 = vmatpush2.msra.mxu0 %v140
  %415 = vmatprep.subr.mxu0 0.0
  %416 = vmatpush2.msra.mxu0 %v139
  %417 = vmatprep.subr.mxu0 0.0
  %418 = vmatpush2.msra.mxu0 %v138
  %419 = vmatprep.subr.mxu0 0.0
  %420 = vmatpush2.msra.mxu0 %v137
  %421 = vmatprep.subr.mxu0 0.0
  %422 = vmatpush2.msra.mxu0 %v136
  %423 = vmatprep.mubr.f32.mxu0 %v19
  %424 = vmatmul.mubr.f32.gmra.mxu0 %v18
  %v425 = vpop.f32.mrf.mxu0
  %v426 = vadd.f32 %v326, %v425
  %v427 = vpop.f32.mrf.mxu0
  %428 = vmatprep.mubr.f32.mxu0 %v25
  %429 = vmatmul.mubr.f32.gmra.mxu0 %v24
  %v430 = vpop.f32.mrf.mxu0
  %v431 = vadd.f32 %v331, %v430
  %v432 = vpop.f32.mrf.mxu0
  %433 = vmatprep.mubr.f32.mxu0 %v31
  %434 = vmatmul.mubr.f32.gmra.mxu0 %v30
  %v435 = vpop.f32.mrf.mxu0
  %v436 = vadd.f32 %v336, %v435
  %v437 = vpop.f32.mrf.mxu0
  %438 = vmatprep.mubr.f32.mxu0 %v37
  %439 = vmatmul.mubr.f32.gmra.mxu0 %v36
  %v440 = vpop.f32.mrf.mxu0
  %v441 = vadd.f32 %v341, %v440
  %v442 = vpop.f32.mrf.mxu0
  %443 = vmatprep.mubr.f32.mxu0 %v43
  %444 = vmatmul.mubr.f32.gmra.mxu0 %v42
  %v445 = vpop.f32.mrf.mxu0
  %v446 = vadd.f32 %v346, %v445
  %v447 = vpop.f32.mrf.mxu0
  %448 = vmatprep.mubr.f32.mxu0 %v49
  %449 = vmatmul.mubr.f32.gmra.mxu0 %v48
  %v450 = vpop.f32.mrf.mxu0
  %v451 = vadd.f32 %v351, %v450
  %v452 = vpop.f32.mrf.mxu0
  %453 = vmatprep.mubr.f32.mxu0 %v55
  %454 = vmatmul.mubr.f32.gmra.mxu0 %v54
  %v455 = vpop.f32.mrf.mxu0
  %v456 = vadd.f32 %v356, %v455
  %v457 = vpop.f32.mrf.mxu0
  %458 = vdwg.mxu0
  %vm459 = vcmask 15360
  %460 = vst.msk [vmem:[%s3] sm:$0xff] %vm459, %v426
  %461 = vst.msk [vmem:[%s3 + $0x8] sm:$0xff] %vm459, %v431
  %462 = vst.msk [vmem:[%s3 + $0x10] sm:$0xff] %vm459, %v436
  %463 = vst.msk [vmem:[%s3 + $0x18] sm:$0xff] %vm459, %v441
  %464 = vst.msk [vmem:[%s3 + $0x20] sm:$0xff] %vm459, %v446
  %465 = vst.msk [vmem:[%s3 + $0x28] sm:$0xff] %vm459, %v451
  %466 = vst.msk [vmem:[%s3 + $0x30] sm:$0xff] %vm459, %v456
  // Predicated region
  $region14: #{tpu_custom_call.1} parent=0 // pred_check
    _
  $region15: #{tpu_custom_call.1} parent=0 // pred_check_branch
    %468 = sbr.rel (0) target = $region17
  $region16: #{tpu_custom_call.1} parent=0 // pred_region
    _
  $region17: #{tpu_custom_call.1} parent=0 // pred_fallthru
    _
  // Predicated region
  $region18: #{tpu_custom_call.1} parent=0 // pred_check
    _
  $region19: #{tpu_custom_call.1} parent=0 // pred_check_branch
    %470 = sbr.rel (0) target = $region21
  $region20: #{tpu_custom_call.1} parent=0 // pred_region
    _
  $region21: #{tpu_custom_call.1} parent=0 // pred_fallthru
    _

</llo_original>
